<compile_context>
chip_gen: v5e
topology: v5e:2x2
jax: 0.10.0
libtpu: 0.0.40
codegen_flags: <defaults>
</compile_context>

<pallas_src>
import functools

import jax
import jax.numpy as jnp
from jax.experimental import pallas as pl
from jax.experimental.pallas import tpu as pltpu


def _importance_kernel(q_ref, k_ref, w0q_ref, w0k_ref, b0_ref, w1_ref, b1_ref,
                       w2_ref, b2_ref, o_ref, *, b_tile, nq, nk):
    # q_ref:  [b_tile*Nq, D]        bf16
    # k_ref:  [b_tile*Nk, D]        bf16
    # w0q_ref / w0k_ref: [D, HH]    bf16   (pre-transposed, heads stacked on out)
    # b0_ref: [1, HH]               f32
    # w1_ref: [HH, HH]              bf16   (block-diagonal over heads, (in,out))
    # b1_ref: [1, HH]               f32
    # w2_ref: [1, HH]               f32    (pre-scaled by 1/num_heads)
    # b2_ref: [1, 1]                f32    (sum_h b2_h / num_heads)
    # o_ref:  [b_tile, Nq*Nk]       f32
    hh = w1_ref.shape[1]

    # Fused head projections on the MXU; b0 folded into the q side only.
    qp = jnp.dot(q_ref[...], w0q_ref[...],
                 preferred_element_type=jnp.float32) + b0_ref[...]
    kp = jnp.dot(k_ref[...], w0k_ref[...],
                 preferred_element_type=jnp.float32)

    # Outer (q_i, k_j) combine + first ReLU -> [b_tile*Nq*Nk, HH].
    qp3 = qp.reshape(b_tile, nq, hh)
    kp3 = kp.reshape(b_tile, nk, hh)
    hid = qp3[:, :, None, :] + kp3[:, None, :, :]          # [b_tile, Nq, Nk, HH]
    hid = jnp.maximum(hid, 0.0).reshape(b_tile * nq * nk, hh)

    # All heads' Linear(Hdim, Hdim) as one block-diagonal matmul (bf16 MXU).
    h1 = jnp.dot(hid.astype(jnp.bfloat16), w1_ref[...],
                 preferred_element_type=jnp.float32)
    h1 = jnp.maximum(h1 + b1_ref[...], 0.0)

    # Linear(Hdim, 1) of every head + mean over heads: one multiply, one reduce.
    h1 = h1.reshape(b_tile, nq * nk, hh)
    o_ref[...] = jnp.sum(h1 * w2_ref[...][None], axis=-1) + b2_ref[...]


def _choose_b_tile(B, Nq, Nk, HH, budget_bytes=8 << 20):
    """Largest divisor of B whose [b*Nq*Nk, HH] f32 intermediate fits the budget."""
    best = 1
    for bt in range(1, B + 1):
        if B % bt == 0 and bt * Nq * Nk * HH * 4 <= budget_bytes:
            best = bt
    return best


def importance_scorer_pallas(q_summary, k_summary, params, num_heads):
    """q_summary: [B, Nq, D], k_summary: [B, Nk, D] -> scores [B, Nq, Nk]."""
    B, Nq, D = q_summary.shape
    Nk = k_summary.shape[1]
    wq, wk, b0, w1, b1, w2, b2 = params
    Hdim = wq.shape[1]
    HH = num_heads * Hdim

    # ---- one-time weight preprocessing (wrapper-side XLA, never in-kernel) ----
    # nn.Linear stores (out, in); stack heads on the output axis, (in, out) layout.
    w0q = jnp.transpose(wq, (2, 0, 1)).reshape(D, HH).astype(jnp.bfloat16)
    w0k = jnp.transpose(wk, (2, 0, 1)).reshape(D, HH).astype(jnp.bfloat16)
    b0f = b0.reshape(1, HH).astype(jnp.float32)
    # Block-diagonal Linear(Hdim, Hdim): one big matmul for all heads.
    # (Intended for small num_heads; for many heads a head grid axis is better.)
    w1_bd = jnp.zeros((HH, HH), jnp.float32)
    for h in range(num_heads):
        w1_bd = w1_bd.at[h * Hdim:(h + 1) * Hdim,
                         h * Hdim:(h + 1) * Hdim].set(w1[h].T)
    w1_bd = w1_bd.astype(jnp.bfloat16)
    b1f = b1.reshape(1, HH).astype(jnp.float32)
    # Fold the mean over heads into the last layer.
    w2f = (w2.reshape(1, HH) / num_heads).astype(jnp.float32)
    b2f = (jnp.sum(b2) / num_heads).reshape(1, 1).astype(jnp.float32)

    # Activations: fold batch into the matmul M dimension; bf16 MXU operands.
    q2 = q_summary.reshape(B * Nq, D).astype(jnp.bfloat16)
    k2 = k_summary.reshape(B * Nk, D).astype(jnp.bfloat16)

    b_tile = _choose_b_tile(B, Nq, Nk, HH)
    num_tiles = B // b_tile

    kernel = functools.partial(_importance_kernel, b_tile=b_tile, nq=Nq, nk=Nk)
    const = lambda shape: pl.BlockSpec(shape, lambda t: (0,) * len(shape))

    out = pl.pallas_call(
        kernel,
        out_shape=jax.ShapeDtypeStruct((B, Nq * Nk), jnp.float32),
        grid=(num_tiles,),
        in_specs=[
            pl.BlockSpec((b_tile * Nq, D), lambda t: (t, 0)),   # q (batch-flat)
            pl.BlockSpec((b_tile * Nk, D), lambda t: (t, 0)),   # k (batch-flat)
            const((D, HH)),      # w0q
            const((D, HH)),      # w0k
            const((1, HH)),      # b0
            const((HH, HH)),     # w1 (block-diagonal)
            const((1, HH)),      # b1
            const((1, HH)),      # w2 (mean folded in)
            const((1, 1)),       # b2 (mean folded in)
        ],
        out_specs=pl.BlockSpec((b_tile, Nq * Nk), lambda t: (t, 0)),
        compiler_params=pltpu.CompilerParams(
            dimension_semantics=("parallel",)),
    )(q2, k2, w0q, w0k, b0f, w1_bd, b1f, w2f, b2f)

    return out.reshape(B, Nq, Nk)


def importance_scorer_reference(q_summary, k_summary, params, num_heads):
    """Pure-JAX f32 replica of the PyTorch forward (share_across_heads=False, head_idx=None)."""
    B, Nq, D = q_summary.shape
    Nk = k_summary.shape[1]
    wq, wk, b0, w1, b1, w2, b2 = params
    qe = jnp.broadcast_to(q_summary[:, :, None, :], (B, Nq, Nk, D))
    ke = jnp.broadcast_to(k_summary[:, None, :, :], (B, Nq, Nk, D))
    feat = jnp.concatenate([qe, ke], axis=-1).reshape(-1, 2 * D)
    per_head = []
    for h in range(num_heads):
        w0_full = jnp.concatenate([wq[h], wk[h]], axis=-1)          # [Hdim, 2D]
        hid = feat @ w0_full.T + b0[h]
        x = jnp.maximum(hid, 0.0) @ w1[h].T + b1[h]
        x = jnp.maximum(x, 0.0) @ w2[h][:, None] + b2[h]
        per_head.append(x)
    scores = jnp.stack(per_head, axis=0).mean(0)
    return scores.reshape(B, Nq, Nk)


def init_params(key, input_dim, hidden_dim, num_heads):
    ks = jax.random.split(key, 7)
    scale = 0.05
    wq = scale * jax.random.normal(ks[0], (num_heads, hidden_dim, input_dim), jnp.float32)
    wk = scale * jax.random.normal(ks[1], (num_heads, hidden_dim, input_dim), jnp.float32)
    b0 = scale * jax.random.normal(ks[2], (num_heads, hidden_dim), jnp.float32)
    w1 = scale * jax.random.normal(ks[3], (num_heads, hidden_dim, hidden_dim), jnp.float32)
    b1 = scale * jax.random.normal(ks[4], (num_heads, hidden_dim), jnp.float32)
    w2 = scale * jax.random.normal(ks[5], (num_heads, hidden_dim), jnp.float32)
    b2 = scale * jax.random.normal(ks[6], (num_heads, 1), jnp.float32)
    return (wq, wk, b0, w1, b1, w2, b2)


if __name__ == "__main__":
    B = 2
    num_q_blocks = 8
    num_k_blocks = 8
    input_dim = 16
    hidden_dim = 128
    num_heads = 2
    # num_layers has no effect on the non-shared (head_networks) path of the
    # PyTorch module, so it does not appear here.

    key = jax.random.PRNGKey(0)
    kq, kk, kparams = jax.random.split(key, 3)
    q_summary = jax.random.normal(kq, (B, num_q_blocks, input_dim), jnp.float32)
    k_summary = jax.random.normal(kk, (B, num_k_blocks, input_dim), jnp.float32)
    params = init_params(kparams, input_dim, hidden_dim, num_heads)

    out = importance_scorer_pallas(q_summary, k_summary, params, num_heads)
    out = jax.block_until_ready(out)

    ref = importance_scorer_reference(q_summary, k_summary, params, num_heads)
    ref = jax.block_until_ready(ref)

    assert out.shape == (B, num_q_blocks, num_k_blocks)
    # Kernel uses bf16 MXU operands (f32 accumulation); reference is all-f32.
    assert jnp.max(jnp.abs(out - ref)) < 2e-2, "mismatch vs reference"
    print("KERNEL_OK")
</pallas_src>

<mosaic_0001>
module attributes {stable_mosaic.version = 11 : i64} {
  func.func @_importance_kernel(%arg0: i32, %arg1: memref<16x16xbf16, #tpu.memory_space<vmem>>, %arg2: memref<16x16xbf16, #tpu.memory_space<vmem>>, %arg3: memref<16x256xbf16, #tpu.memory_space<vmem>>, %arg4: memref<16x256xbf16, #tpu.memory_space<vmem>>, %arg5: memref<1x256xf32, #tpu.memory_space<vmem>>, %arg6: memref<256x256xbf16, #tpu.memory_space<vmem>>, %arg7: memref<1x256xf32, #tpu.memory_space<vmem>>, %arg8: memref<1x256xf32, #tpu.memory_space<vmem>>, %arg9: memref<1x1xf32, #tpu.memory_space<vmem>>, %arg10: memref<2x64xf32, #tpu.memory_space<vmem>>) attributes {dimension_semantics = [#tpu.dimension_semantics<parallel>], iteration_bounds = array<i64: 1>, scalar_prefetch = 0 : i64, scratch_operands = 0 : i64, tpu.core_type = #tpu.core_type<tc>, window_params = [{transform_indices = @transform_0, window_bounds = array<i64: 16, 16>}, {transform_indices = @transform_1, window_bounds = array<i64: 16, 16>}, {pipeline_mode = #tpu.pipeline_mode<synchronous>, transform_indices = @transform_2, window_bounds = array<i64: 16, 256>}, {pipeline_mode = #tpu.pipeline_mode<synchronous>, transform_indices = @transform_3, window_bounds = array<i64: 16, 256>}, {pipeline_mode = #tpu.pipeline_mode<synchronous>, transform_indices = @transform_4, window_bounds = array<i64: 1, 256>}, {pipeline_mode = #tpu.pipeline_mode<synchronous>, transform_indices = @transform_5, window_bounds = array<i64: 256, 256>}, {pipeline_mode = #tpu.pipeline_mode<synchronous>, transform_indices = @transform_6, window_bounds = array<i64: 1, 256>}, {pipeline_mode = #tpu.pipeline_mode<synchronous>, transform_indices = @transform_7, window_bounds = array<i64: 1, 256>}, {pipeline_mode = #tpu.pipeline_mode<synchronous>, transform_indices = @transform_8, window_bounds = array<i64: 1, 1>}, {transform_indices = @transform_9, window_bounds = array<i64: 2, 64>}]} {
    %c0 = arith.constant 0 : index
    %c0_0 = arith.constant 0 : index
    %0 = vector.load %arg1[%c0, %c0_0] : memref<16x16xbf16, #tpu.memory_space<vmem>>, vector<16x16xbf16>
    %c0_1 = arith.constant 0 : index
    %c0_2 = arith.constant 0 : index
    %1 = vector.load %arg3[%c0_1, %c0_2] : memref<16x256xbf16, #tpu.memory_space<vmem>>, vector<16x256xbf16>
    %cst = arith.constant dense<0.000000e+00> : vector<16x256xf32>
    %2 = tpu.matmul %0, %1, %cst {dimension_numbers = #tpu.dot_dimension_numbers<[1], [0], [0], [1], [0, 0, 1, 1], [], []>} : vector<16x16xbf16>, vector<16x256xbf16>, vector<16x256xf32> -> vector<16x256xf32>
    %c0_3 = arith.constant 0 : index
    %c0_4 = arith.constant 0 : index
    %3 = vector.load %arg5[%c0_3, %c0_4] : memref<1x256xf32, #tpu.memory_space<vmem>>, vector<1x256xf32>
    %4 = vector.broadcast %3 : vector<1x256xf32> to vector<16x256xf32>
    %5 = arith.addf %2, %4 : vector<16x256xf32>
    %c0_5 = arith.constant 0 : index
    %c0_6 = arith.constant 0 : index
    %6 = vector.load %arg2[%c0_5, %c0_6] : memref<16x16xbf16, #tpu.memory_space<vmem>>, vector<16x16xbf16>
    %c0_7 = arith.constant 0 : index
    %c0_8 = arith.constant 0 : index
    %7 = vector.load %arg4[%c0_7, %c0_8] : memref<16x256xbf16, #tpu.memory_space<vmem>>, vector<16x256xbf16>
    %cst_9 = arith.constant dense<0.000000e+00> : vector<16x256xf32>
    %8 = tpu.matmul %6, %7, %cst_9 {dimension_numbers = #tpu.dot_dimension_numbers<[1], [0], [0], [1], [0, 0, 1, 1], [], []>} : vector<16x16xbf16>, vector<16x256xbf16>, vector<16x256xf32> -> vector<16x256xf32>
    %9 = vector.shape_cast %5 : vector<16x256xf32> to vector<2x8x256xf32>
    %10 = vector.shape_cast %8 : vector<16x256xf32> to vector<2x8x256xf32>
    %11 = vector.shape_cast %9 : vector<2x8x256xf32> to vector<2x8x1x256xf32>
    %12 = vector.shape_cast %10 : vector<2x8x256xf32> to vector<2x1x8x256xf32>
    %13 = vector.broadcast %11 : vector<2x8x1x256xf32> to vector<2x8x8x256xf32>
    %14 = vector.broadcast %12 : vector<2x1x8x256xf32> to vector<2x8x8x256xf32>
    %15 = arith.addf %13, %14 : vector<2x8x8x256xf32>
    %cst_10 = arith.constant 0.000000e+00 : f32
    %16 = vector.broadcast %cst_10 : f32 to vector<2x8x8x256xf32>
    %17 = arith.maximumf %15, %16 : vector<2x8x8x256xf32>
    %18 = vector.shape_cast %17 : vector<2x8x8x256xf32> to vector<128x256xf32>
    %19 = arith.truncf %18 : vector<128x256xf32> to vector<128x256xbf16>
    %c0_11 = arith.constant 0 : index
    %c0_12 = arith.constant 0 : index
    %20 = vector.load %arg6[%c0_11, %c0_12] : memref<256x256xbf16, #tpu.memory_space<vmem>>, vector<256x256xbf16>
    %cst_13 = arith.constant dense<0.000000e+00> : vector<128x256xf32>
    %21 = tpu.matmul %19, %20, %cst_13 {dimension_numbers = #tpu.dot_dimension_numbers<[1], [0], [0], [1], [0, 0, 1, 1], [], []>} : vector<128x256xbf16>, vector<256x256xbf16>, vector<128x256xf32> -> vector<128x256xf32>
    %c0_14 = arith.constant 0 : index
    %c0_15 = arith.constant 0 : index
    %22 = vector.load %arg7[%c0_14, %c0_15] : memref<1x256xf32, #tpu.memory_space<vmem>>, vector<1x256xf32>
    %23 = vector.broadcast %22 : vector<1x256xf32> to vector<128x256xf32>
    %24 = arith.addf %21, %23 : vector<128x256xf32>
    %cst_16 = arith.constant 0.000000e+00 : f32
    %25 = vector.broadcast %cst_16 : f32 to vector<128x256xf32>
    %26 = arith.maximumf %24, %25 : vector<128x256xf32>
    %27 = vector.shape_cast %26 : vector<128x256xf32> to vector<2x64x256xf32>
    %c0_17 = arith.constant 0 : index
    %c0_18 = arith.constant 0 : index
    %28 = vector.load %arg8[%c0_17, %c0_18] : memref<1x256xf32, #tpu.memory_space<vmem>>, vector<1x256xf32>
    %29 = vector.shape_cast %28 : vector<1x256xf32> to vector<1x1x256xf32>
    %30 = vector.broadcast %29 : vector<1x1x256xf32> to vector<2x64x256xf32>
    %31 = arith.mulf %27, %30 : vector<2x64x256xf32>
    %cst_19 = arith.constant dense<0.000000e+00> : vector<2x64xf32>
    %32 = vector.multi_reduction <add>, %31, %cst_19 [2] : vector<2x64x256xf32> to vector<2x64xf32>
    %c0_20 = arith.constant 0 : index
    %c0_21 = arith.constant 0 : index
    %33 = vector.load %arg9[%c0_20, %c0_21] : memref<1x1xf32, #tpu.memory_space<vmem>>, vector<1x1xf32>
    %34 = vector.broadcast %33 : vector<1x1xf32> to vector<2x64xf32>
    %35 = arith.addf %32, %34 : vector<2x64xf32>
    %c0_22 = arith.constant 0 : index
    %c0_23 = arith.constant 0 : index
    %36 = vector.load %arg10[%c0_22, %c0_23] : memref<2x64xf32, #tpu.memory_space<vmem>>, vector<2x64xf32>
    tpu.vector_store %arg10[%c0_22, %c0_23], %35 {strides = array<i32>} : memref<2x64xf32, #tpu.memory_space<vmem>>, vector<2x64xf32>,
    return
  }
  func.func @transform_0(%arg0: i32) -> (i32, i32) {
    %c0_i32 = arith.constant 0 : i32
    %c0_i32_0 = arith.constant 0 : i32
    return %arg0, %c0_i32 : i32, i32
  }
  func.func @transform_1(%arg0: i32) -> (i32, i32) {
    %c0_i32 = arith.constant 0 : i32
    %c0_i32_0 = arith.constant 0 : i32
    return %arg0, %c0_i32 : i32, i32
  }
  func.func @transform_2(%arg0: i32) -> (i32, i32) {
    %c0_i32 = arith.constant 0 : i32
    %c0_i32_0 = arith.constant 0 : i32
    %c0_i32_1 = arith.constant 0 : i32
    return %c0_i32, %c0_i32_0 : i32, i32
  }
  func.func @transform_3(%arg0: i32) -> (i32, i32) {
    %c0_i32 = arith.constant 0 : i32
    %c0_i32_0 = arith.constant 0 : i32
    %c0_i32_1 = arith.constant 0 : i32
    return %c0_i32, %c0_i32_0 : i32, i32
  }
  func.func @transform_4(%arg0: i32) -> (i32, i32) {
    %c0_i32 = arith.constant 0 : i32
    %c0_i32_0 = arith.constant 0 : i32
    %c0_i32_1 = arith.constant 0 : i32
    return %c0_i32, %c0_i32_0 : i32, i32
  }
  func.func @transform_5(%arg0: i32) -> (i32, i32) {
    %c0_i32 = arith.constant 0 : i32
    %c0_i32_0 = arith.constant 0 : i32
    %c0_i32_1 = arith.constant 0 : i32
    return %c0_i32, %c0_i32_0 : i32, i32
  }
  func.func @transform_6(%arg0: i32) -> (i32, i32) {
    %c0_i32 = arith.constant 0 : i32
    %c0_i32_0 = arith.constant 0 : i32
    %c0_i32_1 = arith.constant 0 : i32
    return %c0_i32, %c0_i32_0 : i32, i32
  }
  func.func @transform_7(%arg0: i32) -> (i32, i32) {
    %c0_i32 = arith.constant 0 : i32
    %c0_i32_0 = arith.constant 0 : i32
    %c0_i32_1 = arith.constant 0 : i32
    return %c0_i32, %c0_i32_0 : i32, i32
  }
  func.func @transform_8(%arg0: i32) -> (i32, i32) {
    %c0_i32 = arith.constant 0 : i32
    %c0_i32_0 = arith.constant 0 : i32
    %c0_i32_1 = arith.constant 0 : i32
    return %c0_i32, %c0_i32_0 : i32, i32
  }
  func.func @transform_9(%arg0: i32) -> (i32, i32) {
    %c0_i32 = arith.constant 0 : i32
    %c0_i32_0 = arith.constant 0 : i32
    return %arg0, %c0_i32 : i32, i32
  }
}

</mosaic_0001>

<llo_original>
// kernel: tpu_custom_call.1
$region0: #{tpu_custom_call.1}
  #allocation0 [shape = 'u32[]', space=smem, size = 0x4, offset = 0x4, fixed_abs, tag = 'smem constant byte address 0x4 - core index']
  #allocation1 [shape = 'u32[72,128]{1,0:T(1,128)}', space=vmem, size = 0x9000, scoped, tag = 'internal scratch']
  #allocation2 [shape = 'f32[1,1]{1,0:T(1,128)S(1)}', space=vmem, size = 0x200, scoped, tag = 'scoped memory for tpu_custom_call.1']
  %s0 = inlined_call_operand.hbm [shape: bf16[16,16], index: 0, kind: input, shape index: {}]
  %s1 = inlined_call_operand.hbm [shape: bf16[16,16], index: 1, kind: input, shape index: {}]
  %s2 = inlined_call_operand.hbm [shape: bf16[16,256], index: 2, kind: input, shape index: {}]
  %s3 = inlined_call_operand.hbm [shape: bf16[16,256], index: 3, kind: input, shape index: {}]
  %s4 = inlined_call_operand.vmem [shape: f32[1,256], index: 4, kind: input, shape index: {}]
  %s5 = inlined_call_operand.hbm [shape: bf16[256,256], index: 5, kind: input, shape index: {}]
  %s6 = inlined_call_operand.vmem [shape: f32[1,256], index: 6, kind: input, shape index: {}]
  %s7 = inlined_call_operand.vmem [shape: f32[1,256], index: 7, kind: input, shape index: {}]
  %s8 = inlined_call_operand.<no memory space> [shape: f32[1,1], index: 8, kind: input, shape index: {}]
  %s9 = inlined_call_operand.hbm [shape: f32[2,64], index: 9, kind: output, shape index: {}]
  %s10 = sld [smem:[#allocation0]]
  $region66: #{tpu_custom_call.1} parent=0
    _
  %s12 = ssub.s32 1, %s10
  %s13 = scalar_select 0, %s12, %s10
  %v14 = vstv %s8
  %15 = vst [vmem:[#allocation2] sm:$0x1] %v14
  $region1: #{tpu_custom_call.1} parent=0
    #allocation3 [shape = 'u8[4096]{0}', space=vmem, size = 0x1000, scoped, tag = 'input window, operand 0, single buffered']
    #allocation4 [shape = 's32[1]{0}', space=sflag, size = 0x4, scoped, tag = 'scoped memory for tpu_custom_call.1']
    #allocation5 [shape = 's32[1]{0}', space=sflag, size = 0x4, scoped, tag = 'scoped memory for tpu_custom_call.1']
    #allocation6 [shape = 'u8[4096]{0}', space=vmem, size = 0x1000, scoped, tag = 'input window, operand 1, single buffered']
    #allocation7 [shape = 's32[1]{0}', space=sflag, size = 0x4, scoped, tag = 'scoped memory for tpu_custom_call.1']
    #allocation8 [shape = 'u8[8192]{0}', space=vmem, size = 0x2000, scoped, tag = 'input window, operand 2, single buffered']
    #allocation9 [shape = 'u8[8192]{0}', space=vmem, size = 0x2000, scoped, tag = 'input window, operand 3, single buffered']
    #allocation10 [shape = 's32[1]{0}', space=sflag, size = 0x4, scoped, tag = 'scoped memory for tpu_custom_call.1']
    #allocation11 [shape = 'u8[131072]{0}', space=vmem, size = 0x20000, scoped, tag = 'input window, operand 5, single buffered']
    #allocation12 [shape = 'u8[1024]{0}', space=vmem, size = 0x400, scoped, tag = 'output window, operand 0, single buffered']
    %16 = vsyncpa [#allocation4], 0
    %17 = vsyncpa [#allocation7], 0
    %18 = vsyncpa [#allocation10], 0
    %19 = vsyncpa [#allocation5], 0
    // Predicated region
    $region2: #{tpu_custom_call.1} parent=1 // pred_check
      _
    $region3: #{tpu_custom_call.1} parent=1 // pred_check_branch
      %21 = sbr.rel (0) target = $region5
    $region4: #{tpu_custom_call.1} parent=1 // pred_region
      %23 = vsyncadd [#allocation4], 0
      %s24 = sshll.u32 %s0, 4
      %s25 = int_to_ptr.hbm [resolvable:$true] %s24
      %s26 = sshll.u32 [#allocation3], 4
      %s27 = int_to_ptr.vmem [resolvable:$true] %s26
      %32 = dma.hbm_to_vmem [thread:$0]  %s25, 128, %s27, [#allocation4], 64, 64, 4
    $region5: #{tpu_custom_call.1} parent=1 // pred_fallthru
      _
    // Predicated region
    $region6: #{tpu_custom_call.1} parent=1 // pred_check
      _
    $region7: #{tpu_custom_call.1} parent=1 // pred_check_branch
      %34 = sbr.rel (0) target = $region9
    $region8: #{tpu_custom_call.1} parent=1 // pred_region
      %36 = vsyncadd [#allocation7], 0
      %s37 = sshll.u32 %s1, 4
      %s38 = int_to_ptr.hbm [resolvable:$true] %s37
      %s39 = sshll.u32 [#allocation6], 4
      %s40 = int_to_ptr.vmem [resolvable:$true] %s39
      %45 = dma.hbm_to_vmem [thread:$0]  %s38, 128, %s40, [#allocation7], 64, 64, 4
    $region9: #{tpu_custom_call.1} parent=1 // pred_fallthru
      _
    // Predicated region
    $region10: #{tpu_custom_call.1} parent=1 // pred_check
      _
    $region11: #{tpu_custom_call.1} parent=1 // pred_check_branch
      %47 = sbr.rel (0) target = $region13
    $region12: #{tpu_custom_call.1} parent=1 // pred_region
      %49 = vsyncadd [#allocation7], 0
      %s50 = sshll.u32 %s2, 4
      %s51 = int_to_ptr.hbm [resolvable:$true] %s50
      %s52 = sshll.u32 [#allocation8], 4
      %s53 = int_to_ptr.vmem [resolvable:$true] %s52
      %58 = dma.hbm_to_vmem [thread:$0]  %s51, 256, %s53, [#allocation7], 128, 128, 8
    $region13: #{tpu_custom_call.1} parent=1 // pred_fallthru
      _
    // Predicated region
    $region14: #{tpu_custom_call.1} parent=1 // pred_check
      _
    $region15: #{tpu_custom_call.1} parent=1 // pred_check_branch
      %60 = sbr.rel (0) target = $region17
    $region16: #{tpu_custom_call.1} parent=1 // pred_region
      %62 = vsyncadd [#allocation10], 0
      %s63 = sshll.u32 %s3, 4
      %s64 = int_to_ptr.hbm [resolvable:$true] %s63
      %s65 = sshll.u32 [#allocation9], 4
      %s66 = int_to_ptr.vmem [resolvable:$true] %s65
      %71 = dma.hbm_to_vmem [thread:$0]  %s64, 256, %s66, [#allocation10], 128, 128, 8
    $region17: #{tpu_custom_call.1} parent=1 // pred_fallthru
      _
    // Predicated region
    $region18: #{tpu_custom_call.1} parent=1 // pred_check
      _
    $region19: #{tpu_custom_call.1} parent=1 // pred_check_branch
      %73 = sbr.rel (0) target = $region21
    $region20: #{tpu_custom_call.1} parent=1 // pred_region
      _
    $region21: #{tpu_custom_call.1} parent=1 // pred_fallthru
      _
    // Predicated region
    $region22: #{tpu_custom_call.1} parent=1 // pred_check
      _
    $region23: #{tpu_custom_call.1} parent=1 // pred_check_branch
      %75 = sbr.rel (0) target = $region25
    $region24: #{tpu_custom_call.1} parent=1 // pred_region
      %77 = vsyncadd [#allocation10], 0
      %s78 = sshll.u32 %s5, 4
      %s79 = int_to_ptr.hbm [resolvable:$true] %s78
      %s80 = sshll.u32 [#allocation11], 4
      %s81 = int_to_ptr.vmem [resolvable:$true] %s80
      %86 = dma.hbm_to_vmem [thread:$0]  %s79, 4096, %s81, [#allocation10], 128, 128, 8
    $region25: #{tpu_custom_call.1} parent=1 // pred_fallthru
      _
    // Predicated region
    $region26: #{tpu_custom_call.1} parent=1 // pred_check
      _
    $region27: #{tpu_custom_call.1} parent=1 // pred_check_branch
      %88 = sbr.rel (0) target = $region29
    $region28: #{tpu_custom_call.1} parent=1 // pred_region
      _
    $region29: #{tpu_custom_call.1} parent=1 // pred_fallthru
      _
    // Predicated region
    $region30: #{tpu_custom_call.1} parent=1 // pred_check
      _
    $region31: #{tpu_custom_call.1} parent=1 // pred_check_branch
      %90 = sbr.rel (0) target = $region33
    $region32: #{tpu_custom_call.1} parent=1 // pred_region
      _
    $region33: #{tpu_custom_call.1} parent=1 // pred_fallthru
      _
    // Predicated region
    $region34: #{tpu_custom_call.1} parent=1 // pred_check
      _
    $region35: #{tpu_custom_call.1} parent=1 // pred_check_branch
      %92 = sbr.rel (0) target = $region37
    $region36: #{tpu_custom_call.1} parent=1 // pred_region
      _
    $region37: #{tpu_custom_call.1} parent=1 // pred_fallthru
      _
    // Predicated region
    $region38: #{tpu_custom_call.1} parent=1 // pred_check
      _
    $region39: #{tpu_custom_call.1} parent=1 // pred_check_branch
      %94 = sbr.rel (0) target = $region41
    $region40: #{tpu_custom_call.1} parent=1 // pred_region
      %96 = dma.done [#allocation4], 128
    $region41: #{tpu_custom_call.1} parent=1 // pred_fallthru
      _
    // Predicated region
    $region42: #{tpu_custom_call.1} parent=1 // pred_check
      _
    $region43: #{tpu_custom_call.1} parent=1 // pred_check_branch
      %98 = sbr.rel (0) target = $region45
    $region44: #{tpu_custom_call.1} parent=1 // pred_region
      %100 = dma.done [#allocation7], 128
    $region45: #{tpu_custom_call.1} parent=1 // pred_fallthru
      _
    // Predicated region
    $region46: #{tpu_custom_call.1} parent=1 // pred_check
      _
    $region47: #{tpu_custom_call.1} parent=1 // pred_check_branch
      %102 = sbr.rel (0) target = $region49
    $region48: #{tpu_custom_call.1} parent=1 // pred_region
      %104 = dma.done [#allocation7], 256
    $region49: #{tpu_custom_call.1} parent=1 // pred_fallthru
      _
    // Predicated region
    $region50: #{tpu_custom_call.1} parent=1 // pred_check
      _
    $region51: #{tpu_custom_call.1} parent=1 // pred_check_branch
      %106 = sbr.rel (0) target = $region53
    $region52: #{tpu_custom_call.1} parent=1 // pred_region
      %108 = dma.done [#allocation10], 256
    $region53: #{tpu_custom_call.1} parent=1 // pred_fallthru
      _
    // Predicated region
    $region54: #{tpu_custom_call.1} parent=1 // pred_check
      _
    $region55: #{tpu_custom_call.1} parent=1 // pred_check_branch
      %110 = sbr.rel (0) target = $region57
    $region56: #{tpu_custom_call.1} parent=1 // pred_region
      %112 = dma.done [#allocation10], 4096
    $region57: #{tpu_custom_call.1} parent=1 // pred_fallthru
      _
    %v114 = vld [vmem:[#allocation3] sm:$0xf]
    %v115 = vld [vmem:[#allocation3 + $0x4] sm:$0xf]
    %v116 = vld [vmem:[#allocation8] sm:$0xff]
    %v117 = vld [vmem:[#allocation8 + $0x8] sm:$0xff]
    %v118 = vld [vmem:[%s4] sm:$0x3]
    %v120 = vperm.slane %v118, 0
    %v121 = vperm.slane %v118, 1
    %v126 = vunpack.c.l.b16 %v114
    %v127 = vunpack.c.l.b16 %v115
    %v128 = vpack.c.b16 %v127, %v126
    %v131 = vunpack.c.l.b16 %v116
    %v132 = vunpack.c.h.b16 %v116
    %v133 = vunpack.c.l.b16 %v117
    %v134 = vunpack.c.h.b16 %v117
    %v135 = vpack.c.b16 %v133, %v131
    %v136 = vpack.c.b16 %v134, %v132
    %vm139 = vcmask 130048
    %v141 = vsel %vm139, %v128, 0
    %143 = vmatpush.bf16.msra.mxu0 0
    %144 = vmatpush.bf16.msra.mxu0 0
    %145 = vmatpush.bf16.msra.mxu0 0
    %146 = vmatpush.bf16.msra.mxu0 0
    %147 = vmatpush.bf16.msra.mxu0 0
    %148 = vmatpush.bf16.msra.mxu0 0
    %149 = vmatpush.bf16.msra.mxu0 0
    %150 = vmatpush.bf16.msra.mxu0 %v135
    %151 = vmatmul.bf16.gmra.mxu0 %v141
    %v152 = vpop.f32.mrf.mxu0
    %v153 = vadd.f32 %v120, %v152
    %v154 = vpop.f32.mrf.mxu0
    %v155 = vadd.f32 %v120, %v154
    %156 = vdwg.mxu0
    %157 = vmatpush.bf16.msra.mxu0 0
    %158 = vmatpush.bf16.msra.mxu0 0
    %159 = vmatpush.bf16.msra.mxu0 0
    %160 = vmatpush.bf16.msra.mxu0 0
    %161 = vmatpush.bf16.msra.mxu0 0
    %162 = vmatpush.bf16.msra.mxu0 0
    %163 = vmatpush.bf16.msra.mxu0 0
    %164 = vmatpush.bf16.msra.mxu0 %v136
    %165 = vmatmul.bf16.gmra.mxu0 %v141
    %v166 = vpop.f32.mrf.mxu0
    %v167 = vadd.f32 %v121, %v166
    %v168 = vpop.f32.mrf.mxu0
    %v169 = vadd.f32 %v121, %v168
    %170 = vdwg.mxu0
    %v171 = vld [vmem:[#allocation6] sm:$0xf]
    %v172 = vld [vmem:[#allocation6 + $0x4] sm:$0xf]
    %v173 = vld [vmem:[#allocation9] sm:$0xff]
    %v174 = vld [vmem:[#allocation9 + $0x8] sm:$0xff]
    %v177 = vunpack.c.l.b16 %v171
    %v178 = vunpack.c.l.b16 %v172
    %v179 = vpack.c.b16 %v178, %v177
    %v182 = vunpack.c.l.b16 %v173
    %v183 = vunpack.c.h.b16 %v173
    %v184 = vunpack.c.l.b16 %v174
    %v185 = vunpack.c.h.b16 %v174
    %v186 = vpack.c.b16 %v184, %v182
    %v187 = vpack.c.b16 %v185, %v183
    %v191 = vsel %vm139, %v179, 0
    %193 = vmatpush.bf16.msra.mxu0 0
    %194 = vmatpush.bf16.msra.mxu0 0
    %195 = vmatpush.bf16.msra.mxu0 0
    %196 = vmatpush.bf16.msra.mxu0 0
    %197 = vmatpush.bf16.msra.mxu0 0
    %198 = vmatpush.bf16.msra.mxu0 0
    %199 = vmatpush.bf16.msra.mxu0 0
    %200 = vmatpush.bf16.msra.mxu0 %v186
    %201 = vmatmul.bf16.gmra.mxu0 %v191
    %v202 = vpop.f32.mrf.mxu0
    %v203 = vadd.f32 0.0, %v202
    %v204 = vpop.f32.mrf.mxu0
    %v205 = vadd.f32 0.0, %v204
    %206 = vdwg.mxu0
    %207 = vmatpush.bf16.msra.mxu0 0
    %208 = vmatpush.bf16.msra.mxu0 0
    %209 = vmatpush.bf16.msra.mxu0 0
    %210 = vmatpush.bf16.msra.mxu0 0
    %211 = vmatpush.bf16.msra.mxu0 0
    %212 = vmatpush.bf16.msra.mxu0 0
    %213 = vmatpush.bf16.msra.mxu0 0
    %214 = vmatpush.bf16.msra.mxu0 %v187
    %215 = vmatmul.bf16.gmra.mxu0 %v191
    %v216 = vpop.f32.mrf.mxu0
    %v217 = vadd.f32 0.0, %v216
    %v218 = vpop.f32.mrf.mxu0
    %v219 = vadd.f32 0.0, %v218
    %220 = vdwg.mxu0
    %v225 = vrot.slane %v167, 7
    %v226 = vrot.slane %v169, 7
    %vm227 = vcmask 1040384
    %v228 = vsel %vm227, %v153, %v225
    %vm229 = vcmask 1041409
    %v230 = vsel %vm229, %v153, %v225
    %v231 = vrot.slane %v230, 1
    %vm232 = vcmask 1042434
    %v233 = vsel %vm232, %v153, %v225
    %v234 = vrot.slane %v233, 2
    %vm235 = vcmask 1043459
    %v236 = vsel %vm235, %v153, %v225
    %v237 = vrot.slane %v236, 3
    %vm238 = vcmask 1044484
    %v239 = vsel %vm238, %v153, %v225
    %v240 = vrot.slane %v239, 4
    %vm241 = vcmask 1045509
    %v242 = vsel %vm241, %v153, %v225
    %v243 = vrot.slane %v242, 5
    %vm244 = vcmask 1046534
    %v245 = vsel %vm244, %v153, %v225
    %v246 = vrot.slane %v245, 6
    %vm247 = vcmask 1046528
    %v248 = vsel %vm247, %v225, %v153
    %v249 = vrot.slane %v248, 7
    %v250 = vsel %vm227, %v155, %v226
    %v251 = vsel %vm229, %v155, %v226
    %v252 = vrot.slane %v251, 1
    %v253 = vsel %vm232, %v155, %v226
    %v254 = vrot.slane %v253, 2
    %v255 = vsel %vm235, %v155, %v226
    %v256 = vrot.slane %v255, 3
    %v257 = vsel %vm238, %v155, %v226
    %v258 = vrot.slane %v257, 4
    %v259 = vsel %vm241, %v155, %v226
    %v260 = vrot.slane %v259, 5
    %v261 = vsel %vm244, %v155, %v226
    %v262 = vrot.slane %v261, 6
    %v263 = vsel %vm247, %v226, %v155
    %v264 = vrot.slane %v263, 7
    %v265 = vperm.slane %v228, 0
    %v266 = vperm.slane %v228, 1
    %v267 = vperm.slane %v231, 0
    %v268 = vperm.slane %v231, 1
    %v269 = vperm.slane %v234, 0
    %v270 = vperm.slane %v234, 1
    %v271 = vperm.slane %v237, 0
    %v272 = vperm.slane %v237, 1
    %v273 = vperm.slane %v240, 0
    %v274 = vperm.slane %v240, 1
    %v275 = vperm.slane %v243, 0
    %v276 = vperm.slane %v243, 1
    %v277 = vperm.slane %v246, 0
    %v278 = vperm.slane %v246, 1
    %v279 = vperm.slane %v249, 0
    %v280 = vperm.slane %v249, 1
    %v281 = vperm.slane %v250, 0
    %v282 = vperm.slane %v250, 1
    %v283 = vperm.slane %v252, 0
    %v284 = vperm.slane %v252, 1
    %v285 = vperm.slane %v254, 0
    %v286 = vperm.slane %v254, 1
    %v287 = vperm.slane %v256, 0
    %v288 = vperm.slane %v256, 1
    %v289 = vperm.slane %v258, 0
    %v290 = vperm.slane %v258, 1
    %v291 = vperm.slane %v260, 0
    %v292 = vperm.slane %v260, 1
    %v293 = vperm.slane %v262, 0
    %v294 = vperm.slane %v262, 1
    %v295 = vperm.slane %v264, 0
    %v296 = vperm.slane %v264, 1
    %v329 = vadd.f32 %v265, %v203
    %v330 = vadd.f32 %v266, %v217
    %v331 = vadd.f32 %v267, %v203
    %v332 = vadd.f32 %v268, %v217
    %v333 = vadd.f32 %v269, %v203
    %v334 = vadd.f32 %v270, %v217
    %v335 = vadd.f32 %v271, %v203
    %v336 = vadd.f32 %v272, %v217
    %v337 = vadd.f32 %v273, %v203
    %v338 = vadd.f32 %v274, %v217
    %v339 = vadd.f32 %v275, %v203
    %v340 = vadd.f32 %v276, %v217
    %v341 = vadd.f32 %v277, %v203
    %v342 = vadd.f32 %v278, %v217
    %v343 = vadd.f32 %v279, %v203
    %v344 = vadd.f32 %v280, %v217
    %v345 = vadd.f32 %v281, %v205
    %v346 = vadd.f32 %v282, %v219
    %v347 = vadd.f32 %v283, %v205
    %v348 = vadd.f32 %v284, %v219
    %v349 = vadd.f32 %v285, %v205
    %v350 = vadd.f32 %v286, %v219
    %v351 = vadd.f32 %v287, %v205
    %v352 = vadd.f32 %v288, %v219
    %v353 = vadd.f32 %v289, %v205
    %v354 = vadd.f32 %v290, %v219
    %v355 = vadd.f32 %v291, %v205
    %v356 = vadd.f32 %v292, %v219
    %v357 = vadd.f32 %v293, %v205
    %v358 = vadd.f32 %v294, %v219
    %v359 = vadd.f32 %v295, %v205
    %v360 = vadd.f32 %v296, %v219
    %v361 = vmax.f32 %v329, 0.0
    %v362 = vmax.f32 %v330, 0.0
    %v363 = vmax.f32 %v331, 0.0
    %v364 = vmax.f32 %v332, 0.0
    %v365 = vmax.f32 %v333, 0.0
    %v366 = vmax.f32 %v334, 0.0
    %v367 = vmax.f32 %v335, 0.0
    %v368 = vmax.f32 %v336, 0.0
    %v369 = vmax.f32 %v337, 0.0
    %v370 = vmax.f32 %v338, 0.0
    %v371 = vmax.f32 %v339, 0.0
    %v372 = vmax.f32 %v340, 0.0
    %v373 = vmax.f32 %v341, 0.0
    %v374 = vmax.f32 %v342, 0.0
    %v375 = vmax.f32 %v343, 0.0
    %v376 = vmax.f32 %v344, 0.0
    %v377 = vmax.f32 %v345, 0.0
    %v378 = vmax.f32 %v346, 0.0
    %v379 = vmax.f32 %v347, 0.0
    %v380 = vmax.f32 %v348, 0.0
    %v381 = vmax.f32 %v349, 0.0
    %v382 = vmax.f32 %v350, 0.0
    %v383 = vmax.f32 %v351, 0.0
    %v384 = vmax.f32 %v352, 0.0
    %v385 = vmax.f32 %v353, 0.0
    %v386 = vmax.f32 %v354, 0.0
    %v387 = vmax.f32 %v355, 0.0
    %v388 = vmax.f32 %v356, 0.0
    %v389 = vmax.f32 %v357, 0.0
    %v390 = vmax.f32 %v358, 0.0
    %v391 = vmax.f32 %v359, 0.0
    %v392 = vmax.f32 %v360, 0.0
    %v393 = vpack.c.bf16 %v363, %v361
    %v394 = vpack.c.bf16 %v364, %v362
    %v395 = vpack.c.bf16 %v367, %v365
    %v396 = vpack.c.bf16 %v368, %v366
    %v397 = vpack.c.bf16 %v371, %v369
    %v398 = vpack.c.bf16 %v372, %v370
    %v399 = vpack.c.bf16 %v375, %v373
    %v400 = vpack.c.bf16 %v376, %v374
    %v401 = vpack.c.bf16 %v379, %v377
    %v402 = vpack.c.bf16 %v380, %v378
    %v403 = vpack.c.bf16 %v383, %v381
    %v404 = vpack.c.bf16 %v384, %v382
    %v405 = vpack.c.bf16 %v387, %v385
    %v406 = vpack.c.bf16 %v388, %v386
    %v407 = vpack.c.bf16 %v391, %v389
    %v408 = vpack.c.bf16 %v392, %v390
    %v409 = vld [vmem:[#allocation11] sm:$0xff]
    %v410 = vld [vmem:[#allocation11 + $0x8] sm:$0xff]
    %v411 = vld [vmem:[#allocation11 + $0x10] sm:$0xff]
    %v412 = vld [vmem:[#allocation11 + $0x18] sm:$0xff]
    %v413 = vld [vmem:[#allocation11 + $0x20] sm:$0xff]
    %v414 = vld [vmem:[#allocation11 + $0x28] sm:$0xff]
    %v415 = vld [vmem:[#allocation11 + $0x30] sm:$0xff]
    %v416 = vld [vmem:[#allocation11 + $0x38] sm:$0xff]
    %v417 = vld [vmem:[#allocation11 + $0x40] sm:$0xff]
    %v418 = vld [vmem:[#allocation11 + $0x48] sm:$0xff]
    %v419 = vld [vmem:[#allocation11 + $0x50] sm:$0xff]
    %v420 = vld [vmem:[#allocation11 + $0x58] sm:$0xff]
    %v421 = vld [vmem:[#allocation11 + $0x60] sm:$0xff]
    %v422 = vld [vmem:[#allocation11 + $0x68] sm:$0xff]
    %v423 = vld [vmem:[#allocation11 + $0x70] sm:$0xff]
    %v424 = vld [vmem:[#allocation11 + $0x78] sm:$0xff]
    %v425 = vld [vmem:[#allocation11 + $0x80] sm:$0xff]
    %v426 = vld [vmem:[#allocation11 + $0x88] sm:$0xff]
    %v427 = vld [vmem:[#allocation11 + $0x90] sm:$0xff]
    %v428 = vld [vmem:[#allocation11 + $0x98] sm:$0xff]
    %v429 = vld [vmem:[#allocation11 + $0xa0] sm:$0xff]
    %v430 = vld [vmem:[#allocation11 + $0xa8] sm:$0xff]
    %v431 = vld [vmem:[#allocation11 + $0xb0] sm:$0xff]
    %v432 = vld [vmem:[#allocation11 + $0xb8] sm:$0xff]
    %v433 = vld [vmem:[#allocation11 + $0xc0] sm:$0xff]
    %v434 = vld [vmem:[#allocation11 + $0xc8] sm:$0xff]
    %v435 = vld [vmem:[#allocation11 + $0xd0] sm:$0xff]
    %v436 = vld [vmem:[#allocation11 + $0xd8] sm:$0xff]
    %v437 = vld [vmem:[#allocation11 + $0xe0] sm:$0xff]
    %v438 = vld [vmem:[#allocation11 + $0xe8] sm:$0xff]
    %v439 = vld [vmem:[#allocation11 + $0xf0] sm:$0xff]
    %v440 = vld [vmem:[#allocation11 + $0xf8] sm:$0xff]
    %v441 = vld [vmem:[%s6] sm:$0x3]
    %v443 = vperm.slane %v441, 0
    %v444 = vperm.slane %v441, 1
    %v479 = vunpack.c.l.b16 %v409
    %v480 = vunpack.c.h.b16 %v409
    %v481 = vunpack.c.l.b16 %v410
    %v482 = vunpack.c.h.b16 %v410
    %v483 = vunpack.c.l.b16 %v411
    %v484 = vunpack.c.h.b16 %v411
    %v485 = vunpack.c.l.b16 %v412
    %v486 = vunpack.c.h.b16 %v412
    %v487 = vunpack.c.l.b16 %v413
    %v488 = vunpack.c.h.b16 %v413
    %v489 = vunpack.c.l.b16 %v414
    %v490 = vunpack.c.h.b16 %v414
    %v491 = vunpack.c.l.b16 %v415
    %v492 = vunpack.c.h.b16 %v415
    %v493 = vunpack.c.l.b16 %v416
    %v494 = vunpack.c.h.b16 %v416
    %v495 = vunpack.c.l.b16 %v417
    %v496 = vunpack.c.h.b16 %v417
    %v497 = vunpack.c.l.b16 %v418
    %v498 = vunpack.c.h.b16 %v418
    %v499 = vunpack.c.l.b16 %v419
    %v500 = vunpack.c.h.b16 %v419
    %v501 = vunpack.c.l.b16 %v420
    %v502 = vunpack.c.h.b16 %v420
    %v503 = vunpack.c.l.b16 %v421
    %v504 = vunpack.c.h.b16 %v421
    %v505 = vunpack.c.l.b16 %v422
    %v506 = vunpack.c.h.b16 %v422
    %v507 = vunpack.c.l.b16 %v423
    %v508 = vunpack.c.h.b16 %v423
    %v509 = vunpack.c.l.b16 %v424
    %v510 = vunpack.c.h.b16 %v424
    %v511 = vunpack.c.l.b16 %v425
    %v512 = vunpack.c.h.b16 %v425
    %v513 = vunpack.c.l.b16 %v426
    %v514 = vunpack.c.h.b16 %v426
    %v515 = vunpack.c.l.b16 %v427
    %v516 = vunpack.c.h.b16 %v427
    %v517 = vunpack.c.l.b16 %v428
    %v518 = vunpack.c.h.b16 %v428
    %v519 = vunpack.c.l.b16 %v429
    %v520 = vunpack.c.h.b16 %v429
    %v521 = vunpack.c.l.b16 %v430
    %v522 = vunpack.c.h.b16 %v430
    %v523 = vunpack.c.l.b16 %v431
    %v524 = vunpack.c.h.b16 %v431
    %v525 = vunpack.c.l.b16 %v432
    %v526 = vunpack.c.h.b16 %v432
    %v527 = vunpack.c.l.b16 %v433
    %v528 = vunpack.c.h.b16 %v433
    %v529 = vunpack.c.l.b16 %v434
    %v530 = vunpack.c.h.b16 %v434
    %v531 = vunpack.c.l.b16 %v435
    %v532 = vunpack.c.h.b16 %v435
    %v533 = vunpack.c.l.b16 %v436
    %v534 = vunpack.c.h.b16 %v436
    %v535 = vunpack.c.l.b16 %v437
    %v536 = vunpack.c.h.b16 %v437
    %v537 = vunpack.c.l.b16 %v438
    %v538 = vunpack.c.h.b16 %v438
    %v539 = vunpack.c.l.b16 %v439
    %v540 = vunpack.c.h.b16 %v439
    %v541 = vunpack.c.l.b16 %v440
    %v542 = vunpack.c.h.b16 %v440
    %v543 = vpack.c.b16 %v481, %v479
    %v544 = vpack.c.b16 %v482, %v480
    %v545 = vpack.c.b16 %v485, %v483
    %v546 = vpack.c.b16 %v486, %v484
    %v547 = vpack.c.b16 %v489, %v487
    %v548 = vpack.c.b16 %v490, %v488
    %v549 = vpack.c.b16 %v493, %v491
    %v550 = vpack.c.b16 %v494, %v492
    %v551 = vpack.c.b16 %v497, %v495
    %v552 = vpack.c.b16 %v498, %v496
    %v553 = vpack.c.b16 %v501, %v499
    %v554 = vpack.c.b16 %v502, %v500
    %v555 = vpack.c.b16 %v505, %v503
    %v556 = vpack.c.b16 %v506, %v504
    %v557 = vpack.c.b16 %v509, %v507
    %v558 = vpack.c.b16 %v510, %v508
    %v559 = vpack.c.b16 %v513, %v511
    %v560 = vpack.c.b16 %v514, %v512
    %v561 = vpack.c.b16 %v517, %v515
    %v562 = vpack.c.b16 %v518, %v516
    %v563 = vpack.c.b16 %v521, %v519
    %v564 = vpack.c.b16 %v522, %v520
    %v565 = vpack.c.b16 %v525, %v523
    %v566 = vpack.c.b16 %v526, %v524
    %v567 = vpack.c.b16 %v529, %v527
    %v568 = vpack.c.b16 %v530, %v528
    %v569 = vpack.c.b16 %v533, %v531
    %v570 = vpack.c.b16 %v534, %v532
    %v571 = vpack.c.b16 %v537, %v535
    %v572 = vpack.c.b16 %v538, %v536
    %v573 = vpack.c.b16 %v541, %v539
    %v574 = vpack.c.b16 %v542, %v540
    %607 = vmatpush.bf16.msra.mxu0 %v557
    %608 = vmatpush.bf16.msra.mxu0 %v555
    %609 = vmatpush.bf16.msra.mxu0 %v553
    %610 = vmatpush.bf16.msra.mxu0 %v551
    %611 = vmatpush.bf16.msra.mxu0 %v549
    %612 = vmatpush.bf16.msra.mxu0 %v547
    %613 = vmatpush.bf16.msra.mxu0 %v545
    %614 = vmatpush.bf16.msra.mxu0 %v543
    %615 = vmatmul.bf16.gmra.mxu0 %v393
    %v616 = vpop.f32.mrf.mxu0
    %v617 = vadd.f32 %v443, %v616
    %v618 = vpop.f32.mrf.mxu0
    %v619 = vadd.f32 %v443, %v618
    %620 = vmatmul.bf16.gmra.mxu0 %v395
    %v621 = vpop.f32.mrf.mxu0
    %v622 = vadd.f32 %v443, %v621
    %v623 = vpop.f32.mrf.mxu0
    %v624 = vadd.f32 %v443, %v623
    %625 = vmatmul.bf16.gmra.mxu0 %v397
    %v626 = vpop.f32.mrf.mxu0
    %v627 = vadd.f32 %v443, %v626
    %v628 = vpop.f32.mrf.mxu0
    %v629 = vadd.f32 %v443, %v628
    %630 = vmatmul.bf16.gmra.mxu0 %v399
    %v631 = vpop.f32.mrf.mxu0
    %v632 = vadd.f32 %v443, %v631
    %v633 = vpop.f32.mrf.mxu0
    %v634 = vadd.f32 %v443, %v633
    %635 = vmatmul.bf16.gmra.mxu0 %v401
    %v636 = vpop.f32.mrf.mxu0
    %v637 = vadd.f32 %v443, %v636
    %v638 = vpop.f32.mrf.mxu0
    %v639 = vadd.f32 %v443, %v638
    %640 = vmatmul.bf16.gmra.mxu0 %v403
    %v641 = vpop.f32.mrf.mxu0
    %v642 = vadd.f32 %v443, %v641
    %v643 = vpop.f32.mrf.mxu0
    %v644 = vadd.f32 %v443, %v643
    %645 = vmatmul.bf16.gmra.mxu0 %v405
    %v646 = vpop.f32.mrf.mxu0
    %v647 = vadd.f32 %v443, %v646
    %v648 = vpop.f32.mrf.mxu0
    %v649 = vadd.f32 %v443, %v648
    %650 = vmatmul.bf16.gmra.mxu0 %v407
    %v651 = vpop.f32.mrf.mxu0
    %v652 = vadd.f32 %v443, %v651
    %v653 = vpop.f32.mrf.mxu0
    %v654 = vadd.f32 %v443, %v653
    %655 = vdwg.mxu0
    %656 = vmatpush.bf16.msra.mxu0 %v573
    %657 = vmatpush.bf16.msra.mxu0 %v571
    %658 = vmatpush.bf16.msra.mxu0 %v569
    %659 = vmatpush.bf16.msra.mxu0 %v567
    %660 = vmatpush.bf16.msra.mxu0 %v565
    %661 = vmatpush.bf16.msra.mxu0 %v563
    %662 = vmatpush.bf16.msra.mxu0 %v561
    %663 = vmatpush.bf16.msra.mxu0 %v559
    %664 = vmatmul.bf16.gmra.mxu0 %v394
    %v665 = vpop.f32.mrf.mxu0
    %v666 = vadd.f32 %v617, %v665
    %v667 = vpop.f32.mrf.mxu0
    %v668 = vadd.f32 %v619, %v667
    %669 = vmatmul.bf16.gmra.mxu0 %v396
    %v670 = vpop.f32.mrf.mxu0
    %v671 = vadd.f32 %v622, %v670
    %v672 = vpop.f32.mrf.mxu0
    %v673 = vadd.f32 %v624, %v672
    %674 = vmatmul.bf16.gmra.mxu0 %v398
    %v675 = vpop.f32.mrf.mxu0
    %v676 = vadd.f32 %v627, %v675
    %v677 = vpop.f32.mrf.mxu0
    %v678 = vadd.f32 %v629, %v677
    %679 = vmatmul.bf16.gmra.mxu0 %v400
    %v680 = vpop.f32.mrf.mxu0
    %v681 = vadd.f32 %v632, %v680
    %v682 = vpop.f32.mrf.mxu0
    %v683 = vadd.f32 %v634, %v682
    %684 = vmatmul.bf16.gmra.mxu0 %v402
    %v685 = vpop.f32.mrf.mxu0
    %v686 = vadd.f32 %v637, %v685
    %v687 = vpop.f32.mrf.mxu0
    %v688 = vadd.f32 %v639, %v687
    %689 = vmatmul.bf16.gmra.mxu0 %v404
    %v690 = vpop.f32.mrf.mxu0
    %v691 = vadd.f32 %v642, %v690
    %v692 = vpop.f32.mrf.mxu0
    %v693 = vadd.f32 %v644, %v692
    %694 = vmatmul.bf16.gmra.mxu0 %v406
    %v695 = vpop.f32.mrf.mxu0
    %v696 = vadd.f32 %v647, %v695
    %v697 = vpop.f32.mrf.mxu0
    %v698 = vadd.f32 %v649, %v697
    %699 = vmatmul.bf16.gmra.mxu0 %v408
    %v700 = vpop.f32.mrf.mxu0
    %v701 = vadd.f32 %v652, %v700
    %v702 = vpop.f32.mrf.mxu0
    %v703 = vadd.f32 %v654, %v702
    %704 = vdwg.mxu0
    %705 = vmatpush.bf16.msra.mxu0 %v558
    %706 = vmatpush.bf16.msra.mxu0 %v556
    %707 = vmatpush.bf16.msra.mxu0 %v554
    %708 = vmatpush.bf16.msra.mxu0 %v552
    %709 = vmatpush.bf16.msra.mxu0 %v550
    %710 = vmatpush.bf16.msra.mxu0 %v548
    %711 = vmatpush.bf16.msra.mxu0 %v546
    %712 = vmatpush.bf16.msra.mxu0 %v544
    %713 = vmatmul.bf16.gmra.mxu0 %v393
    %v714 = vpop.f32.mrf.mxu0
    %v715 = vadd.f32 %v444, %v714
    %v716 = vpop.f32.mrf.mxu0
    %v717 = vadd.f32 %v444, %v716
    %718 = vmatmul.bf16.gmra.mxu0 %v395
    %v719 = vpop.f32.mrf.mxu0
    %v720 = vadd.f32 %v444, %v719
    %v721 = vpop.f32.mrf.mxu0
    %v722 = vadd.f32 %v444, %v721
    %723 = vmatmul.bf16.gmra.mxu0 %v397
    %v724 = vpop.f32.mrf.mxu0
    %v725 = vadd.f32 %v444, %v724
    %v726 = vpop.f32.mrf.mxu0
    %v727 = vadd.f32 %v444, %v726
    %728 = vmatmul.bf16.gmra.mxu0 %v399
    %v729 = vpop.f32.mrf.mxu0
    %v730 = vadd.f32 %v444, %v729
    %v731 = vpop.f32.mrf.mxu0
    %v732 = vadd.f32 %v444, %v731
    %733 = vmatmul.bf16.gmra.mxu0 %v401
    %v734 = vpop.f32.mrf.mxu0
    %v735 = vadd.f32 %v444, %v734
    %v736 = vpop.f32.mrf.mxu0
    %v737 = vadd.f32 %v444, %v736
    %738 = vmatmul.bf16.gmra.mxu0 %v403
    %v739 = vpop.f32.mrf.mxu0
    %v740 = vadd.f32 %v444, %v739
    %v741 = vpop.f32.mrf.mxu0
    %v742 = vadd.f32 %v444, %v741
    %743 = vmatmul.bf16.gmra.mxu0 %v405
    %v744 = vpop.f32.mrf.mxu0
    %v745 = vadd.f32 %v444, %v744
    %v746 = vpop.f32.mrf.mxu0
    %v747 = vadd.f32 %v444, %v746
    %748 = vmatmul.bf16.gmra.mxu0 %v407
    %v749 = vpop.f32.mrf.mxu0
    %v750 = vadd.f32 %v444, %v749
    %v751 = vpop.f32.mrf.mxu0
    %v752 = vadd.f32 %v444, %v751
    %753 = vdwg.mxu0
    %754 = vmatpush.bf16.msra.mxu0 %v574
    %755 = vmatpush.bf16.msra.mxu0 %v572
    %756 = vmatpush.bf16.msra.mxu0 %v570
    %757 = vmatpush.bf16.msra.mxu0 %v568
    %758 = vmatpush.bf16.msra.mxu0 %v566
    %759 = vmatpush.bf16.msra.mxu0 %v564
    %760 = vmatpush.bf16.msra.mxu0 %v562
    %761 = vmatpush.bf16.msra.mxu0 %v560
    %762 = vmatmul.bf16.gmra.mxu0 %v394
    %v763 = vpop.f32.mrf.mxu0
    %v764 = vadd.f32 %v715, %v763
    %v765 = vpop.f32.mrf.mxu0
    %v766 = vadd.f32 %v717, %v765
    %767 = vmatmul.bf16.gmra.mxu0 %v396
    %v768 = vpop.f32.mrf.mxu0
    %v769 = vadd.f32 %v720, %v768
    %v770 = vpop.f32.mrf.mxu0
    %v771 = vadd.f32 %v722, %v770
    %772 = vmatmul.bf16.gmra.mxu0 %v398
    %v773 = vpop.f32.mrf.mxu0
    %v774 = vadd.f32 %v725, %v773
    %v775 = vpop.f32.mrf.mxu0
    %v776 = vadd.f32 %v727, %v775
    %777 = vmatmul.bf16.gmra.mxu0 %v400
    %v778 = vpop.f32.mrf.mxu0
    %v779 = vadd.f32 %v730, %v778
    %v780 = vpop.f32.mrf.mxu0
    %v781 = vadd.f32 %v732, %v780
    %782 = vmatmul.bf16.gmra.mxu0 %v402
    %v783 = vpop.f32.mrf.mxu0
    %v784 = vadd.f32 %v735, %v783
    %v785 = vpop.f32.mrf.mxu0
    %v786 = vadd.f32 %v737, %v785
    %787 = vmatmul.bf16.gmra.mxu0 %v404
    %v788 = vpop.f32.mrf.mxu0
    %v789 = vadd.f32 %v740, %v788
    %v790 = vpop.f32.mrf.mxu0
    %v791 = vadd.f32 %v742, %v790
    %792 = vmatmul.bf16.gmra.mxu0 %v406
    %v793 = vpop.f32.mrf.mxu0
    %v794 = vadd.f32 %v745, %v793
    %v795 = vpop.f32.mrf.mxu0
    %v796 = vadd.f32 %v747, %v795
    %797 = vmatmul.bf16.gmra.mxu0 %v408
    %v798 = vpop.f32.mrf.mxu0
    %v799 = vadd.f32 %v750, %v798
    %v800 = vpop.f32.mrf.mxu0
    %v801 = vadd.f32 %v752, %v800
    %802 = vdwg.mxu0
    %v803 = vmax.f32 %v666, 0.0
    %v804 = vmax.f32 %v764, 0.0
    %v805 = vmax.f32 %v668, 0.0
    %v806 = vmax.f32 %v766, 0.0
    %v807 = vmax.f32 %v671, 0.0
    %v808 = vmax.f32 %v769, 0.0
    %v809 = vmax.f32 %v673, 0.0
    %v810 = vmax.f32 %v771, 0.0
    %v811 = vmax.f32 %v676, 0.0
    %v812 = vmax.f32 %v774, 0.0
    %v813 = vmax.f32 %v678, 0.0
    %v814 = vmax.f32 %v776, 0.0
    %v815 = vmax.f32 %v681, 0.0
    %v816 = vmax.f32 %v779, 0.0
    %v817 = vmax.f32 %v683, 0.0
    %v818 = vmax.f32 %v781, 0.0
    %v819 = vmax.f32 %v686, 0.0
    %v820 = vmax.f32 %v784, 0.0
    %v821 = vmax.f32 %v688, 0.0
    %v822 = vmax.f32 %v786, 0.0
    %v823 = vmax.f32 %v691, 0.0
    %v824 = vmax.f32 %v789, 0.0
    %v825 = vmax.f32 %v693, 0.0
    %v826 = vmax.f32 %v791, 0.0
    %v827 = vmax.f32 %v696, 0.0
    %v828 = vmax.f32 %v794, 0.0
    %v829 = vmax.f32 %v698, 0.0
    %v830 = vmax.f32 %v796, 0.0
    %v831 = vmax.f32 %v701, 0.0
    %v832 = vmax.f32 %v799, 0.0
    %v833 = vmax.f32 %v703, 0.0
    %v834 = vmax.f32 %v801, 0.0
    %v835 = vld [vmem:[%s7] sm:$0x3]
    %v837 = vperm.slane %v835, 0
    %v838 = vperm.slane %v835, 1
    %v841 = vmul.f32 %v803, %v837
    %v842 = vmul.f32 %v804, %v838
    %v843 = vmul.f32 %v805, %v837
    %v844 = vmul.f32 %v806, %v838
    %v845 = vmul.f32 %v807, %v837
    %v846 = vmul.f32 %v808, %v838
    %v847 = vmul.f32 %v809, %v837
    %v848 = vmul.f32 %v810, %v838
    %v849 = vmul.f32 %v811, %v837
    %v850 = vmul.f32 %v812, %v838
    %v851 = vmul.f32 %v813, %v837
    %v852 = vmul.f32 %v814, %v838
    %v853 = vmul.f32 %v815, %v837
    %v854 = vmul.f32 %v816, %v838
    %v855 = vmul.f32 %v817, %v837
    %v856 = vmul.f32 %v818, %v838
    %v857 = vmul.f32 %v819, %v837
    %v858 = vmul.f32 %v820, %v838
    %v859 = vmul.f32 %v821, %v837
    %v860 = vmul.f32 %v822, %v838
    %v861 = vmul.f32 %v823, %v837
    %v862 = vmul.f32 %v824, %v838
    %v863 = vmul.f32 %v825, %v837
    %v864 = vmul.f32 %v826, %v838
    %v865 = vmul.f32 %v827, %v837
    %v866 = vmul.f32 %v828, %v838
    %v867 = vmul.f32 %v829, %v837
    %v868 = vmul.f32 %v830, %v838
    %v869 = vmul.f32 %v831, %v837
    %v870 = vmul.f32 %v832, %v838
    %v871 = vmul.f32 %v833, %v837
    %v872 = vmul.f32 %v834, %v838
    %v873 = vadd.f32 %v841, %v842
    %874 = vadd.xlane.f32.xlu0 %v873
    %v875 = vpop.xlane.xlu0 %874
    %v876 = vadd.f32 %v843, %v844
    %877 = vadd.xlane.f32.xlu0 %v876
    %v878 = vpop.xlane.xlu0 %877
    %v879 = vadd.f32 %v845, %v846
    %880 = vadd.xlane.f32.xlu0 %v879
    %v881 = vpop.xlane.xlu0 %880
    %v882 = vadd.f32 %v847, %v848
    %883 = vadd.xlane.f32.xlu0 %v882
    %v884 = vpop.xlane.xlu0 %883
    %v885 = vadd.f32 %v849, %v850
    %886 = vadd.xlane.f32.xlu0 %v885
    %v887 = vpop.xlane.xlu0 %886
    %v888 = vadd.f32 %v851, %v852
    %889 = vadd.xlane.f32.xlu0 %v888
    %v890 = vpop.xlane.xlu0 %889
    %v891 = vadd.f32 %v853, %v854
    %892 = vadd.xlane.f32.xlu0 %v891
    %v893 = vpop.xlane.xlu0 %892
    %v894 = vadd.f32 %v855, %v856
    %895 = vadd.xlane.f32.xlu0 %v894
    %v896 = vpop.xlane.xlu0 %895
    %v897 = vadd.f32 %v857, %v858
    %898 = vadd.xlane.f32.xlu0 %v897
    %v899 = vpop.xlane.xlu0 %898
    %v900 = vadd.f32 %v859, %v860
    %901 = vadd.xlane.f32.xlu0 %v900
    %v902 = vpop.xlane.xlu0 %901
    %v903 = vadd.f32 %v861, %v862
    %904 = vadd.xlane.f32.xlu0 %v903
    %v905 = vpop.xlane.xlu0 %904
    %v906 = vadd.f32 %v863, %v864
    %907 = vadd.xlane.f32.xlu0 %v906
    %v908 = vpop.xlane.xlu0 %907
    %v909 = vadd.f32 %v865, %v866
    %910 = vadd.xlane.f32.xlu0 %v909
    %v911 = vpop.xlane.xlu0 %910
    %v912 = vadd.f32 %v867, %v868
    %913 = vadd.xlane.f32.xlu0 %v912
    %v914 = vpop.xlane.xlu0 %913
    %v915 = vadd.f32 %v869, %v870
    %916 = vadd.xlane.f32.xlu0 %v915
    %v917 = vpop.xlane.xlu0 %916
    %v918 = vadd.f32 %v871, %v872
    %919 = vadd.xlane.f32.xlu0 %v918
    %v920 = vpop.xlane.xlu0 %919
    %v921 = vld [vmem:[#allocation2] sm:$0x1]
    %v923 = vperm.slane %v921, 0
    %924 = vset.pattern.permute.xlu0 0
    %925 = vperm.xlu0 %924, %v923
    %v926 = vpop.permute.xlu0 %925
    %v928 = vadd.f32 %v875, %v926
    %v929 = vadd.f32 %v878, %v926
    %v930 = vadd.f32 %v881, %v926
    %v931 = vadd.f32 %v884, %v926
    %v932 = vadd.f32 %v887, %v926
    %v933 = vadd.f32 %v890, %v926
    %v934 = vadd.f32 %v893, %v926
    %v935 = vadd.f32 %v896, %v926
    %v936 = vadd.f32 %v899, %v926
    %v937 = vadd.f32 %v902, %v926
    %v938 = vadd.f32 %v905, %v926
    %v939 = vadd.f32 %v908, %v926
    %v940 = vadd.f32 %v911, %v926
    %v941 = vadd.f32 %v914, %v926
    %v942 = vadd.f32 %v917, %v926
    %v943 = vadd.f32 %v920, %v926
    %v960 = vlaneseq
    %v961 = vand.u32 %v960, 127
    %v962 = vperm.slane %v928, %v961
    %v963 = vadd.s32 %v961, 4294967288
    %v964 = vperm.slane %v929, %v963
    %vm965 = vcmask 130112
    %v966 = vsel %vm965, %v964, %v962
    %v967 = vadd.s32 %v961, 4294967280
    %v968 = vperm.slane %v930, %v967
    %vm969 = vcmask 195712
    %v970 = vsel %vm969, %v968, %v966
    %v971 = vadd.s32 %v961, 4294967272
    %v972 = vperm.slane %v931, %v971
    %vm973 = vcmask 261312
    %v974 = vsel %vm973, %v972, %v970
    %v975 = vadd.s32 %v961, 4294967264
    %v976 = vperm.slane %v932, %v975
    %vm977 = vcmask 326912
    %v978 = vsel %vm977, %v976, %v974
    %v979 = vadd.s32 %v961, 4294967256
    %v980 = vperm.slane %v933, %v979
    %vm981 = vcmask 392512
    %v982 = vsel %vm981, %v980, %v978
    %v983 = vadd.s32 %v961, 4294967248
    %v984 = vperm.slane %v934, %v983
    %vm985 = vcmask 458112
    %v986 = vsel %vm985, %v984, %v982
    %v987 = vadd.s32 %v961, 4294967240
    %v988 = vperm.slane %v935, %v987
    %vm989 = vcmask 523712
    %v990 = vsel %vm989, %v988, %v986
    %v991 = vperm.slane %v936, %v961
    %v992 = vperm.slane %v937, %v963
    %v993 = vsel %vm965, %v992, %v991
    %v994 = vperm.slane %v938, %v967
    %v995 = vsel %vm969, %v994, %v993
    %v996 = vperm.slane %v939, %v971
    %v997 = vsel %vm973, %v996, %v995
    %v998 = vperm.slane %v940, %v975
    %v999 = vsel %vm977, %v998, %v997
    %v1000 = vperm.slane %v941, %v979
    %v1001 = vsel %vm981, %v1000, %v999
    %v1002 = vperm.slane %v942, %v983
    %v1003 = vsel %vm985, %v1002, %v1001
    %v1004 = vperm.slane %v943, %v987
    %v1005 = vsel %vm989, %v1004, %v1003
    %v1006 = vsel %vm229, %v1005, %v990
    %vm1008 = vcmask 517120
    %1009 = vst.msk [vmem:[#allocation12] sm:$0x3] %vm1008, %v1006
    // Predicated region
    $region58: #{tpu_custom_call.1} parent=1 // pred_check
      _
    $region59: #{tpu_custom_call.1} parent=1 // pred_check_branch
      %1011 = sbr.rel (0) target = $region61
    $region60: #{tpu_custom_call.1} parent=1 // pred_region
      %1013 = vsyncadd [#allocation5], 0
      %s1015 = sshll.u32 [#allocation12], 4
      %s1016 = int_to_ptr.vmem [resolvable:$true] %s1015
      %s1017 = sshll.u32 %s9, 4
      %s1018 = int_to_ptr.hbm [resolvable:$true] %s1017
      %1020 = dma.vmem_to_hbm [thread:$0]  %s1016, 32, %s1018, [#allocation5]
    $region61: #{tpu_custom_call.1} parent=1 // pred_fallthru
      _
    // Predicated region
    $region62: #{tpu_custom_call.1} parent=1 // pred_check
      _
    $region63: #{tpu_custom_call.1} parent=1 // pred_check_branch
      %1022 = sbr.rel (0) target = $region65
    $region64: #{tpu_custom_call.1} parent=1 // pred_region
      %1024 = dma.done [#allocation5], 32
    $region65: #{tpu_custom_call.1} parent=1 // pred_fallthru
      _
    %1025 = vsyncpa [#allocation4], 1
    %1026 = vsyncpa [#allocation7], 1
    %1027 = vsyncpa [#allocation10], 1
    %1028 = vsyncpa [#allocation5], 1

</llo_original>
